<compile_context>
chip_gen: v7x
topology: tpu7x:2x2x1
jax: 0.10.0
libtpu: 0.0.40
codegen_flags: <defaults>
</compile_context>

<pallas_src>
import functools

import jax
import jax.numpy as jnp
from jax.experimental import pallas as pl
from jax.experimental.pallas import tpu as pltpu

_EPS = 1e-8  # matches torch.nn.functional.cosine_similarity default eps


# ----------------------------------------------------------------------------
# Pallas kernel: per-group cosine similarity (+ optional temperature softmax)
# ----------------------------------------------------------------------------
def _sim_kernel(q_ref, k_ref, o_ref, *, similarity_type, inv_temp):
    # q_ref: (B, C)   k_ref: (P, C)   o_ref: (B, P)
    q = q_ref[...]                                   # native dtype
    k = k_ref[...]                                   # native dtype

    # ---- key-side cosine normalization, fused (lane-broadcast, no relayout) ----
    kf = k.astype(jnp.float32)
    k_sumsq = jnp.sum(kf * kf, axis=-1, keepdims=True)          # (P, 1), f32
    inv_k = jnp.minimum(jax.lax.rsqrt(k_sumsq), 1.0 / _EPS)     # 1/max(||k||, eps)
    k_scaled = (kf * inv_k).astype(k.dtype)                     # (P, C), unit rows

    # [B, C] x [P, C]^T -> [B, P] on the MXU, f32 accumulation.
    dot = jax.lax.dot_general(
        q, k_scaled,
        dimension_numbers=(((1,), (1,)), ((), ())),
        preferred_element_type=jnp.float32)

    # ---- query-side cosine normalization ----
    qf = q.astype(jnp.float32)
    q_sumsq = jnp.sum(qf * qf, axis=-1, keepdims=True)          # (B, 1), f32
    inv_q = jnp.minimum(jax.lax.rsqrt(q_sumsq), 1.0 / _EPS)     # EUP rsqrt, clamped
    sim = dot * inv_q                                           # (B, P)

    if similarity_type == "softmax":
        logits = sim * inv_temp
        m = jnp.max(logits, axis=-1, keepdims=True)
        e = jnp.exp(logits - m)                                  # EUP
        inv_den = pl.reciprocal(jnp.sum(e, axis=-1, keepdims=True), approx=True)
        sim = e * inv_den

    o_ref[...] = sim.astype(o_ref.dtype)


def retriever_similarity(queries, keys, *, similarity_type):
    """queries: [B, G, C], keys: [G, P, C] -> sim [B, G, P] (float32)."""
    B, G, C = queries.shape
    Gk, P, Ck = keys.shape
    assert (G, C) == (Gk, Ck)

    # Only cheap layout plumbing in the wrapper; the big key tensor is only
    # ever touched once (by the kernel's DMA).
    q_t = jnp.transpose(queries, (1, 0, 2))            # (G, B, C): groups on grid axis

    kernel = functools.partial(
        _sim_kernel, similarity_type=similarity_type, inv_temp=10.0)  # 1 / 0.1

    flops = 2 * B * G * P * C + G * P * C              # matmul + key scaling
    transcendentals = G * (B + P)                      # rsqrt for q and k norms
    if similarity_type == "softmax":
        transcendentals += B * G * (P + 1)             # exp + reciprocal
    bytes_accessed = (q_t.size * q_t.dtype.itemsize
                      + keys.size * keys.dtype.itemsize
                      + B * G * P * 4)

    sim_gbp = pl.pallas_call(
        kernel,
        out_shape=jax.ShapeDtypeStruct((G, B, P), jnp.float32),
        grid=(G,),
        in_specs=[
            # Per-group query block: (B, C), full extents on the last two dims.
            pl.BlockSpec((pl.Squeezed(), B, C), lambda g: (g, 0, 0)),
            # Per-group keys block in native layout: (P, C), full extents.
            pl.BlockSpec((pl.Squeezed(), P, C), lambda g: (g, 0, 0)),
        ],
        # Full (B, P) tile written per step -> unmasked stores; lane-dense when
        # the production pool size P is a multiple of 128.
        out_specs=pl.BlockSpec((pl.Squeezed(), B, P), lambda g: (g, 0, 0)),
        compiler_params=pltpu.CompilerParams(
            # G >= 2 keeps both v7x TensorCores busy; per-group tiles are tiny,
            # so VMEM stays far under the scoped default on all chips.
            dimension_semantics=("parallel",)),
        cost_estimate=pl.CostEstimate(
            flops=int(flops), transcendentals=int(transcendentals),
            bytes_accessed=int(bytes_accessed)),
    )(q_t, keys)

    return jnp.transpose(sim_gbp, (1, 0, 2))           # (B, G, P)


# ----------------------------------------------------------------------------
# Forward wrapper (glue in plain JAX: top-k, gather, loss)
# ----------------------------------------------------------------------------
def retriever_forward(queries, keys, *, similarity_type, weight_topk,
                      pool_train_keys=True, return_topk_index=True):
    sim = retriever_similarity(queries, keys, similarity_type=similarity_type)

    outputs = {}
    # idx_sim = sim.detach(); eval-mode path (self.training == False), so the
    # random_dropout masking branch is never taken.
    _, idx = jax.lax.top_k(sim, weight_topk)                 # (B, G, K) int32

    if pool_train_keys:
        gathered = jnp.take_along_axis(sim, idx, axis=-1)    # (B, G, K)
        outputs["key_loss"] = -jnp.mean(gathered)
        # TODO(synk): centrifugal_loss needs `last_keys`, which is None at init.

    if return_topk_index:
        outputs["topk_index"] = idx
    return outputs


# ----------------------------------------------------------------------------
# Deterministic synthetic parameter init (mirrors generate_orthogonal_matrix)
# ----------------------------------------------------------------------------
def generate_orthogonal_keys(rng, groups, pool_size, key_hidden):
    """Rows of each [pool_size, key_hidden] block are orthonormal."""
    mats = []
    for _ in range(groups):
        rng, sub = jax.random.split(rng)
        a = jax.random.normal(sub, (key_hidden, pool_size), dtype=jnp.float32)
        q_mat, _ = jnp.linalg.qr(a)                # orthonormal columns
        mats.append(q_mat.T)                       # (pool_size, key_hidden)
    return jnp.stack(mats, axis=0)                 # (G, P, C)


# ----------------------------------------------------------------------------
# Pure-JAX reference (for a silent sanity check)
# ----------------------------------------------------------------------------
def _reference_sim(queries, keys, similarity_type):
    q = queries[:, :, None, :]                           # (B, G, 1, C)
    k = keys[None]                                       # (1, G, P, C)
    dot = jnp.sum(q * k, axis=-1)                        # (B, G, P)
    qn = jnp.maximum(jnp.linalg.norm(q, axis=-1), _EPS)
    kn = jnp.maximum(jnp.linalg.norm(k, axis=-1), _EPS)
    sim = dot / (qn * kn)
    if similarity_type == "softmax":
        sim = jax.nn.softmax(sim / 0.1, axis=-1)
    return sim


if __name__ == "__main__":
    # Small, module-consistent config:
    #   model_hidden_size = 64, groups = 4 -> key_hidden_size C = 16
    #   pool_size P = 8, weight_topk = 2, similarity_type = 'softmax'
    B, model_hidden, groups = 2, 64, 4
    pool_size, weight_topk = 8, 2
    key_hidden = model_hidden // groups

    root = jax.random.PRNGKey(0)
    k_q, k_keys = jax.random.split(root)

    # Stand-in for the (frozen) sentence-transformer embeddings: [B, model_hidden]
    query_embeddings = jax.random.normal(k_q, (B, model_hidden), dtype=jnp.float32)
    queries = query_embeddings.reshape(B, groups, key_hidden)   # 'b (g c) -> b g c'
    keys = generate_orthogonal_keys(k_keys, groups, pool_size, key_hidden)

    outputs = retriever_forward(
        queries, keys,
        similarity_type="softmax",
        weight_topk=weight_topk,
        pool_train_keys=True,
        return_topk_index=True,
    )
    jax.block_until_ready(outputs)

    # Silent correctness checks of the Pallas similarity against pure JAX.
    # (Tolerance accounts for the EUP rsqrt / approx-reciprocal fast paths.)
    for sim_type, tol in (("cosine", 2e-3), ("softmax", 2e-3)):
        got = retriever_similarity(queries, keys, similarity_type=sim_type)
        want = _reference_sim(queries, keys, sim_type)
        assert jnp.allclose(got, want, atol=tol, rtol=tol), sim_type

    assert outputs["topk_index"].shape == (B, groups, weight_topk)
    assert outputs["key_loss"].shape == ()
    assert bool(jnp.isfinite(outputs["key_loss"]))

    print("KERNEL_OK")
</pallas_src>

<mosaic_0001>
module attributes {stable_mosaic.version = 11 : i64} {
  func.func @_sim_kernel(%arg0: i32, %arg1: memref<1x2x16xf32, #tpu.memory_space<vmem>>, %arg2: memref<1x8x16xf32, #tpu.memory_space<vmem>>, %arg3: memref<1x2x8xf32, #tpu.memory_space<vmem>>) attributes {dimension_semantics = [#tpu.dimension_semantics<parallel>], iteration_bounds = array<i64: 4>, scalar_prefetch = 0 : i64, scratch_operands = 0 : i64, tpu.core_type = #tpu.core_type<tc>, window_params = [{transform_indices = @transform_0, window_bounds = array<i64: 1, 2, 16>}, {transform_indices = @transform_1, window_bounds = array<i64: 1, 8, 16>}, {transform_indices = @transform_2, window_bounds = array<i64: 1, 2, 8>}]} {
    %c0 = arith.constant 0 : index
    %c0_0 = arith.constant 0 : index
    %c0_1 = arith.constant 0 : index
    %0 = vector.load %arg1[%c0, %c0_0, %c0_1] : memref<1x2x16xf32, #tpu.memory_space<vmem>>, vector<1x2x16xf32>
    %1 = vector.shape_cast %0 : vector<1x2x16xf32> to vector<2x16xf32>
    %c0_2 = arith.constant 0 : index
    %c0_3 = arith.constant 0 : index
    %c0_4 = arith.constant 0 : index
    %2 = vector.load %arg2[%c0_2, %c0_3, %c0_4] : memref<1x8x16xf32, #tpu.memory_space<vmem>>, vector<1x8x16xf32>
    %3 = vector.shape_cast %2 : vector<1x8x16xf32> to vector<8x16xf32>
    %4 = arith.mulf %3, %3 : vector<8x16xf32>
    %cst = arith.constant dense<0.000000e+00> : vector<8xf32>
    %5 = vector.multi_reduction <add>, %4, %cst [1] : vector<8x16xf32> to vector<8xf32>
    %6 = vector.shape_cast %5 : vector<8xf32> to vector<8x1xf32>
    %7 = math.rsqrt %6 : vector<8x1xf32>
    %cst_5 = arith.constant 1.000000e+08 : f32
    %8 = vector.broadcast %cst_5 : f32 to vector<8x1xf32>
    %9 = arith.minimumf %7, %8 : vector<8x1xf32>
    %10 = vector.broadcast %9 : vector<8x1xf32> to vector<8x16xf32>
    %11 = arith.mulf %3, %10 : vector<8x16xf32>
    %cst_6 = arith.constant dense<0.000000e+00> : vector<2x8xf32>
    %12 = tpu.matmul %1, %11, %cst_6 {dimension_numbers = #tpu.dot_dimension_numbers<[1], [1], [0], [0], [0, 0, 1, 0], [], []>} : vector<2x16xf32>, vector<8x16xf32>, vector<2x8xf32> -> vector<2x8xf32>
    %13 = arith.mulf %1, %1 : vector<2x16xf32>
    %cst_7 = arith.constant dense<0.000000e+00> : vector<2xf32>
    %14 = vector.multi_reduction <add>, %13, %cst_7 [1] : vector<2x16xf32> to vector<2xf32>
    %15 = vector.shape_cast %14 : vector<2xf32> to vector<2x1xf32>
    %16 = math.rsqrt %15 : vector<2x1xf32>
    %cst_8 = arith.constant 1.000000e+08 : f32
    %17 = vector.broadcast %cst_8 : f32 to vector<2x1xf32>
    %18 = arith.minimumf %16, %17 : vector<2x1xf32>
    %19 = vector.broadcast %18 : vector<2x1xf32> to vector<2x8xf32>
    %20 = arith.mulf %12, %19 : vector<2x8xf32>
    %cst_9 = arith.constant 1.000000e+01 : f32
    %21 = vector.broadcast %cst_9 : f32 to vector<2x8xf32>
    %22 = arith.mulf %20, %21 : vector<2x8xf32>
    %cst_10 = arith.constant dense<0xFF800000> : vector<2xf32>
    %23 = vector.multi_reduction <maximumf>, %22, %cst_10 [1] : vector<2x8xf32> to vector<2xf32>
    %24 = vector.shape_cast %23 : vector<2xf32> to vector<2x1xf32>
    %25 = vector.broadcast %24 : vector<2x1xf32> to vector<2x8xf32>
    %26 = arith.subf %22, %25 : vector<2x8xf32>
    %27 = math.exp %26 : vector<2x8xf32>
    %cst_11 = arith.constant dense<0.000000e+00> : vector<2xf32>
    %28 = vector.multi_reduction <add>, %27, %cst_11 [1] : vector<2x8xf32> to vector<2xf32>
    %29 = vector.shape_cast %28 : vector<2xf32> to vector<2x1xf32>
    %30 = tpu.reciprocal %29 {approx = true} : vector<2x1xf32> -> vector<2x1xf32>
    %31 = vector.broadcast %30 : vector<2x1xf32> to vector<2x8xf32>
    %32 = arith.mulf %27, %31 : vector<2x8xf32>
    %c0_12 = arith.constant 0 : index
    %c0_13 = arith.constant 0 : index
    %c0_14 = arith.constant 0 : index
    %33 = vector.load %arg3[%c0_12, %c0_13, %c0_14] : memref<1x2x8xf32, #tpu.memory_space<vmem>>, vector<1x2x8xf32>
    %34 = vector.shape_cast %33 : vector<1x2x8xf32> to vector<2x8xf32>
    %35 = vector.shape_cast %32 : vector<2x8xf32> to vector<1x2x8xf32>
    tpu.vector_store %arg3[%c0_12, %c0_13, %c0_14], %35 {strides = array<i32>} : memref<1x2x8xf32, #tpu.memory_space<vmem>>, vector<1x2x8xf32>,
    return
  }
  func.func @transform_0(%arg0: i32) -> (i32, i32, i32) {
    %c0_i32 = arith.constant 0 : i32
    %c0_i32_0 = arith.constant 0 : i32
    %c0_i32_1 = arith.constant 0 : i32
    return %arg0, %c0_i32, %c0_i32_0 : i32, i32, i32
  }
  func.func @transform_1(%arg0: i32) -> (i32, i32, i32) {
    %c0_i32 = arith.constant 0 : i32
    %c0_i32_0 = arith.constant 0 : i32
    %c0_i32_1 = arith.constant 0 : i32
    return %arg0, %c0_i32, %c0_i32_0 : i32, i32, i32
  }
  func.func @transform_2(%arg0: i32) -> (i32, i32, i32) {
    %c0_i32 = arith.constant 0 : i32
    %c0_i32_0 = arith.constant 0 : i32
    %c0_i32_1 = arith.constant 0 : i32
    return %arg0, %c0_i32, %c0_i32_0 : i32, i32, i32
  }
}

</mosaic_0001>

<llo_original>
// kernel: tpu_custom_call.1
$region0: #{tpu_custom_call.1}
  #allocation0 [shape = 'u32[]', space=smem, size = 0x4, offset = 0x4, fixed_abs, tag = 'smem constant byte address 0x4 - core index']
  #allocation1 [shape = 'u32[144,128]{1,0:T(1,128)}', space=vmem, size = 0x12000, scoped, tag = 'internal scratch']
  %s0 = inlined_call_operand.hbm [shape: f32[4,2,16], index: 0, kind: input, shape index: {}]
  %s1 = inlined_call_operand.hbm [shape: f32[4,8,16], index: 1, kind: input, shape index: {}]
  %s2 = inlined_call_operand.hbm [shape: f32[4,2,8], index: 2, kind: output, shape index: {}]
  %s3 = sld [smem:[#allocation0]]
  $region49: #{tpu_custom_call.1} parent=0
    _
  %s5 = ssub.s32 1, %s3
  %s6 = scalar_select 0, %s5, %s3
  $region1: #{tpu_custom_call.1} parent=0
    #allocation2 [shape = 'u8[2048]{0}', space=vmem, size = 0x800, scoped, tag = 'input window, operand 0']
    #allocation3 [shape = 's32[2]{0}', space=sflag, size = 0x8, scoped, tag = 'scoped memory for tpu_custom_call.1']
    #allocation4 [shape = 's32[2]{0}', space=sflag, size = 0x8, scoped, tag = 'scoped memory for tpu_custom_call.1']
    #allocation5 [shape = 'u8[8192]{0}', space=vmem, size = 0x2000, scoped, tag = 'input window, operand 1']
    #allocation6 [shape = 's32[2]{0}', space=sflag, size = 0x8, scoped, tag = 'scoped memory for tpu_custom_call.1']
    #allocation7 [shape = 'u8[2048]{0}', space=vmem, size = 0x800, scoped, tag = 'output window, operand 0']
    %7 = vsyncpa [#allocation3], 0
    %s8 = scalar_lea.sflag [#allocation3], 1
    %9 = vsyncpa %s8, 0
    %10 = vsyncpa [#allocation6], 0
    %s11 = scalar_lea.sflag [#allocation6], 1
    %12 = vsyncpa %s11, 0
    %13 = vsyncpa [#allocation4], 0
    %s14 = scalar_lea.sflag [#allocation4], 1
    %15 = vsyncpa %s14, 0
    loop: start=0, step=1, limit=6
    $region2: #{tpu_custom_call.1} parent=1 // loop_pre_header
      _
    $region3: #{tpu_custom_call.1} parent=1 // loop_header
      %s17 = sphi 0, %s21
      %p18 = scmp.ge.s32.totalorder %s17, 6
      %s27 = sphi 0, %s29
      %s30 = sphi 0, %s27
      %s31 = sphi 0, %s30
      %s47 = sphi 0, %s31
      %s53 = sphi 0, %s55
      %s56 = sphi 0, %s53
      %s57 = sphi 0, %s56
      %s73 = sphi 0, %s57
      %s79 = sphi 0, %s81
      %s82 = sphi 0, %s79
      %s83 = sphi 0, %s82
      %s99 = sphi 0, %s83
    $region4: #{tpu_custom_call.1} parent=1 // loop_header_branch
      %20 = sbr.rel (%p18) target = $region8
    $region5: #{tpu_custom_call.1} parent=1 // loop_body
      %s22 = ssub.s32 %s17, 1
      %s23 = ssub.s32 %s17, 2
      %s24 = sadd.s32 %s17, 1
      %s25 = ssub.s32 %s17, %s24
      %p26 = scmp.eq.s32.totalorder %s25, 0
      %s28 = sadd.s32 %s27, 1
      %s29 = scalar_select %p26, %s27, %s28
      %p32 = pneg %p26
      %p33 = scmp.eq.s32.totalorder %s17, 3
      %p34 = por %p32, %p33
      %p35 = scmp.ne.s32.totalorder %s27, %s30
      %p36 = scmp.eq.s32.totalorder %s17, 0
      %p37 = por %p35, %p36
      %p38 = scmp.ne.s32.totalorder %s27, %s30
      %p39 = scmp.eq.s32.totalorder %s22, 3
      %p40 = por %p38, %p39
      %p41 = scmp.ne.s32.totalorder %s30, %s31
      %p42 = scmp.eq.s32.totalorder %s22, 0
      %p43 = por %p41, %p42
      %p44 = scmp.ne.s32.totalorder %s30, %s31
      %p45 = scmp.eq.s32.totalorder %s23, 3
      %p46 = por %p44, %p45
      %p48 = scmp.ne.s32.totalorder %s31, %s47
      %p49 = scmp.eq.s32.totalorder %s23, 0
      %p50 = por %p48, %p49
      %s51 = ssub.s32 %s17, %s24
      %p52 = scmp.eq.s32.totalorder %s51, 0
      %s54 = sadd.s32 %s53, 1
      %s55 = scalar_select %p52, %s53, %s54
      %p58 = pneg %p52
      %p59 = scmp.eq.s32.totalorder %s17, 3
      %p60 = por %p58, %p59
      %p61 = scmp.ne.s32.totalorder %s53, %s56
      %p62 = scmp.eq.s32.totalorder %s17, 0
      %p63 = por %p61, %p62
      %p64 = scmp.ne.s32.totalorder %s53, %s56
      %p65 = scmp.eq.s32.totalorder %s22, 3
      %p66 = por %p64, %p65
      %p67 = scmp.ne.s32.totalorder %s56, %s57
      %p68 = scmp.eq.s32.totalorder %s22, 0
      %p69 = por %p67, %p68
      %p70 = scmp.ne.s32.totalorder %s56, %s57
      %p71 = scmp.eq.s32.totalorder %s23, 3
      %p72 = por %p70, %p71
      %p74 = scmp.ne.s32.totalorder %s57, %s73
      %p75 = scmp.eq.s32.totalorder %s23, 0
      %p76 = por %p74, %p75
      %s77 = ssub.s32 %s17, %s24
      %p78 = scmp.eq.s32.totalorder %s77, 0
      %s80 = sadd.s32 %s79, 1
      %s81 = scalar_select %p78, %s79, %s80
      %p84 = pneg %p78
      %p85 = scmp.eq.s32.totalorder %s17, 3
      %p86 = por %p84, %p85
      %p87 = scmp.ne.s32.totalorder %s79, %s82
      %p88 = scmp.eq.s32.totalorder %s17, 0
      %p89 = por %p87, %p88
      %p90 = scmp.ne.s32.totalorder %s79, %s82
      %p91 = scmp.eq.s32.totalorder %s22, 3
      %p92 = por %p90, %p91
      %p93 = scmp.ne.s32.totalorder %s82, %s83
      %p94 = scmp.eq.s32.totalorder %s22, 0
      %p95 = por %p93, %p94
      %p96 = scmp.ne.s32.totalorder %s82, %s83
      %p97 = scmp.eq.s32.totalorder %s23, 3
      %p98 = por %p96, %p97
      %p100 = scmp.ne.s32.totalorder %s83, %s99
      %p101 = scmp.eq.s32.totalorder %s23, 0
      %p102 = por %p100, %p101
      %p103 = scmp.le.s32.totalorder 1, %s17
      %p104 = scmp.lt.s32.totalorder %s17, 5
      %p105 = pnand %p103, %p104
      %p106 = pneg %p105
      // Predicated region
      $region9: #{tpu_custom_call.1} parent=5 // pred_check
        _
      $region10: #{tpu_custom_call.1} parent=5 // pred_check_branch
        %108 = sbr.rel (%p105) target = $region12
      $region11: #{tpu_custom_call.1} parent=5 // pred_region
        %s109 = ssub.s32 %s17, 1
      $region12: #{tpu_custom_call.1} parent=5 // pred_fallthru
        _
      %p110 = scmp.lt.s32.totalorder %s17, 4
      // Predicated region
      $region13: #{tpu_custom_call.1} parent=5 // pred_check
        %p111 = pneg %p110
      $region14: #{tpu_custom_call.1} parent=5 // pred_check_branch
        %113 = sbr.rel (%p111) target = $region16
      $region15: #{tpu_custom_call.1} parent=5 // pred_region
        // Predicated region
        $region17: #{tpu_custom_call.1} parent=15 // pred_check
          %p114 = pneg %p37
        $region18: #{tpu_custom_call.1} parent=15 // pred_check_branch
          %116 = sbr.rel (%p114) target = $region20
        $region19: #{tpu_custom_call.1} parent=15 // pred_region
          %s117 = sand.u32 %s27, 1
          %s118 = scalar_lea.sflag [#allocation3], %s117
          %s119 = sand.u32 %s27, 1
          %s120 = smul.addr %s119, 2
          %s121 = scalar_lea.vmem [#allocation2], %s120
          %s123 = ssub.s32 32, 32
          %124 = vsyncadd %s118, %s123
          %s125 = smul.addr %s17, 32
          %s126 = scalar_lea.hbm %s0, %s125
          %s128 = sshll.u32 %s121, 4
          %s129 = int_to_ptr.vmem [resolvable:$true] %s128
          %131 = dma.hbm_to_vmem [thread:$0]  %s126, 32, %s129, %s118
        $region20: #{tpu_custom_call.1} parent=15 // pred_fallthru
          _
        // Predicated region
        $region21: #{tpu_custom_call.1} parent=15 // pred_check
          %p132 = pneg %p63
        $region22: #{tpu_custom_call.1} parent=15 // pred_check_branch
          %134 = sbr.rel (%p132) target = $region24
        $region23: #{tpu_custom_call.1} parent=15 // pred_region
          %s135 = sand.u32 %s53, 1
          %s136 = scalar_lea.sflag [#allocation6], %s135
          %s137 = sand.u32 %s53, 1
          %s138 = smul.addr %s137, 8
          %s139 = scalar_lea.vmem [#allocation5], %s138
          %s141 = ssub.s32 128, 128
          %142 = vsyncadd %s136, %s141
          %s143 = smul.addr %s17, 128
          %s144 = scalar_lea.hbm %s1, %s143
          %s146 = sshll.u32 %s139, 4
          %s147 = int_to_ptr.vmem [resolvable:$true] %s146
          %149 = dma.hbm_to_vmem [thread:$0]  %s144, 128, %s147, %s136
        $region24: #{tpu_custom_call.1} parent=15 // pred_fallthru
          _
      $region16: #{tpu_custom_call.1} parent=5 // pred_fallthru
        _
      %p150 = scmp.le.s32.totalorder 1, %s17
      %p151 = scmp.lt.s32.totalorder %s17, 5
      %p152 = pnand %p150, %p151
      %p153 = pneg %p152
      // Predicated region
      $region25: #{tpu_custom_call.1} parent=5 // pred_check
        _
      $region26: #{tpu_custom_call.1} parent=5 // pred_check_branch
        %155 = sbr.rel (%p152) target = $region28
      $region27: #{tpu_custom_call.1} parent=5 // pred_region
        %s156 = ssub.s32 %s17, 1
        %s157 = sand.u32 %s30, 1
        %s158 = scalar_lea.sflag [#allocation3], %s157
        %s159 = sand.u32 %s30, 1
        %s160 = smul.addr %s159, 2
        %s161 = scalar_lea.vmem [#allocation2], %s160
        // Predicated region
        $region29: #{tpu_custom_call.1} parent=27 // pred_check
          %p162 = pneg %p43
        $region30: #{tpu_custom_call.1} parent=27 // pred_check_branch
          %164 = sbr.rel (%p162) target = $region32
        $region31: #{tpu_custom_call.1} parent=27 // pred_region
          %165 = dma.done %s158, 32
        $region32: #{tpu_custom_call.1} parent=27 // pred_fallthru
          _
        %s166 = sand.u32 %s56, 1
        %s167 = scalar_lea.sflag [#allocation6], %s166
        %s168 = sand.u32 %s56, 1
        %s169 = smul.addr %s168, 8
        %s170 = scalar_lea.vmem [#allocation5], %s169
        // Predicated region
        $region33: #{tpu_custom_call.1} parent=27 // pred_check
          %p171 = pneg %p69
        $region34: #{tpu_custom_call.1} parent=27 // pred_check_branch
          %173 = sbr.rel (%p171) target = $region36
        $region35: #{tpu_custom_call.1} parent=27 // pred_region
          %174 = dma.done %s167, 128
        $region36: #{tpu_custom_call.1} parent=27 // pred_fallthru
          _
        %s175 = sand.u32 %s30, 1
        %s176 = scalar_lea.sflag [#allocation3], %s175
        %s177 = sand.u32 %s30, 1
        %s178 = smul.addr %s177, 2
        %s179 = scalar_lea.vmem [#allocation2], %s178
        %p180 = pneg %p43
        %p181 = pneg %p40
        %s182 = sand.u32 %s56, 1
        %s183 = scalar_lea.sflag [#allocation6], %s182
        %s184 = sand.u32 %s56, 1
        %s185 = smul.addr %s184, 8
        %s186 = scalar_lea.vmem [#allocation5], %s185
        %p187 = pneg %p69
        %p188 = pneg %p66
        %p189 = pneg %p95
        %p190 = pneg %p92
        %s191 = sand.u32 %s82, 1
        %s192 = scalar_lea.sflag [#allocation4], %s191
        %s193 = sand.u32 %s82, 1
        %s194 = smul.addr %s193, 2
        %s195 = scalar_lea.vmem [#allocation7], %s194
        %v196 = vld [vmem:[%s161] sm:$0x3]
        %v197 = vld [vmem:[%s170] sm:$0xff]
        %v198 = vmul.f32 %v197, %v197
        %vm199 = vcmask 130048
        %v200 = vsel %vm199, %v198, 0.0
        %201 = vadd.xlane.f32.xlu0 %v200
        %v202 = vpop.xlane.xlu0 %201
        %v203 = vrsqrt.pop %v202
        %v204 = vmin.f32 %v203, 1e+08
        %v205 = vmul.f32 %v197, %v204
        %v207 = vsel %vm199, %v196, 0
        %v210 = vsel %vm199, %v205, 0
        %212 = vmatprep.subr.mxu0 0.0
        %213 = vmatpush1.xpose.msra.mxu0 %v210
        %214 = vmatprep.subr.mxu0 0.0
        %215 = vmatpush1.xpose.msra.mxu0 0.0
        %216 = vmatprep.subr.mxu0 0.0
        %217 = vmatpush1.xpose.msra.mxu0 0.0
        %218 = vmatprep.subr.mxu0 0.0
        %219 = vmatpush1.xpose.msra.mxu0 0.0
        %220 = vmatprep.subr.mxu0 0.0
        %221 = vmatpush1.xpose.msra.mxu0 0.0
        %222 = vmatprep.subr.mxu0 0.0
        %223 = vmatpush1.xpose.msra.mxu0 0.0
        %224 = vmatprep.subr.mxu0 0.0
        %225 = vmatpush1.xpose.msra.mxu0 0.0
        %226 = vmatprep.subr.mxu0 0.0
        %227 = vmatpush1.xpose.msra.mxu0 0.0
        %228 = vmatprep.subr.mxu0 0.0
        %229 = vmatpush1.xpose.msra.mxu0 0.0
        %230 = vmatprep.subr.mxu0 0.0
        %231 = vmatpush1.xpose.msra.mxu0 0.0
        %232 = vmatprep.subr.mxu0 0.0
        %233 = vmatpush1.xpose.msra.mxu0 0.0
        %234 = vmatprep.subr.mxu0 0.0
        %235 = vmatpush1.xpose.msra.mxu0 0.0
        %236 = vmatprep.subr.mxu0 0.0
        %237 = vmatpush1.xpose.msra.mxu0 0.0
        %238 = vmatprep.subr.mxu0 0.0
        %239 = vmatpush1.xpose.msra.mxu0 0.0
        %240 = vmatprep.subr.mxu0 0.0
        %241 = vmatpush1.xpose.msra.mxu0 0.0
        %242 = vmatprep.subr.mxu0 0.0
        %243 = vmatpush1.xpose.msra.mxu0 0.0
        %244 = vmatprep.subr.mxu0 0.0
        %245 = vmatpush1.xpose.msra.mxu0 0.0
        %246 = vmatprep.subr.mxu0 0.0
        %247 = vmatpush1.xpose.msra.mxu0 0.0
        %248 = vmatprep.subr.mxu0 0.0
        %249 = vmatpush1.xpose.msra.mxu0 0.0
        %250 = vmatprep.subr.mxu0 0.0
        %251 = vmatpush1.xpose.msra.mxu0 0.0
        %252 = vmatprep.subr.mxu0 0.0
        %253 = vmatpush1.xpose.msra.mxu0 0.0
        %254 = vmatprep.subr.mxu0 0.0
        %255 = vmatpush1.xpose.msra.mxu0 0.0
        %256 = vmatprep.subr.mxu0 0.0
        %257 = vmatpush1.xpose.msra.mxu0 0.0
        %258 = vmatprep.subr.mxu0 0.0
        %259 = vmatpush1.xpose.msra.mxu0 0.0
        %260 = vmatprep.subr.mxu0 0.0
        %261 = vmatpush1.xpose.msra.mxu0 0.0
        %262 = vmatprep.subr.mxu0 0.0
        %263 = vmatpush1.xpose.msra.mxu0 0.0
        %264 = vmatprep.subr.mxu0 0.0
        %265 = vmatpush1.xpose.msra.mxu0 0.0
        %266 = vmatprep.subr.mxu0 0.0
        %267 = vmatpush1.xpose.msra.mxu0 0.0
        %268 = vmatprep.subr.mxu0 0.0
        %269 = vmatpush1.xpose.msra.mxu0 0.0
        %270 = vmatprep.subr.mxu0 0.0
        %271 = vmatpush1.xpose.msra.mxu0 0.0
        %272 = vmatprep.subr.mxu0 0.0
        %273 = vmatpush1.xpose.msra.mxu0 0.0
        %274 = vmatprep.subr.mxu0 0.0
        %275 = vmatpush1.xpose.msra.mxu0 0.0
        %276 = vmatprep.mubr.f32.mxu0 0.0
        %277 = vmatmul.mubr.f32.gmra.mrb[0].mxu0 %v207
        %v278 = vpop.f32.mrb[0].mxu0
        %v279 = vadd.f32 0.0, %v278
        %v280 = vpop.f32.mrb[0].mxu0
        %281 = vdwg.mxu0
        %v282 = vmul.f32 %v196, %v196
        %vm283 = vcmask 123904
        %v284 = vsel %vm283, %v282, 0.0
        %285 = vadd.xlane.f32.xlu0 %v284
        %v286 = vpop.xlane.xlu0 %285
        %v287 = vrsqrt.pop %v286
        %v288 = vmin.f32 %v287, 1e+08
        %v289 = vmul.f32 %v279, %v288
        %v290 = vmul.f32 %v289, 10.0
        %vm291 = vcmask 58368
        %v292 = vsel %vm291, %v290, -inf
        %293 = vmax.xlane.f32.xlu0 %v292
        %v294 = vpop.xlane.xlu0 %293
        %v295 = vsub.f32 %v290, %v294
        %v296 = vmul.f32 %v295, 1.442695
        %v297 = vpow.pop %v296
        %v298 = vsel %vm291, %v297, 0.0
        %299 = vadd.xlane.f32.xlu0 %v298
        %v300 = vpop.xlane.xlu0 %299
        %v301 = vrcp.pop %v300
        %v302 = vmul.f32 %v297, %v301
        %303 = vst.msk [vmem:[%s195] sm:$0x3] %vm291, %v302
        %s304 = sand.u32 %s82, 1
        %s305 = scalar_lea.sflag [#allocation4], %s304
        %s306 = sand.u32 %s82, 1
        %s307 = smul.addr %s306, 2
        %s308 = scalar_lea.vmem [#allocation7], %s307
        // Predicated region
        $region37: #{tpu_custom_call.1} parent=27 // pred_check
          %p309 = pneg %p92
        $region38: #{tpu_custom_call.1} parent=27 // pred_check_branch
          %311 = sbr.rel (%p309) target = $region40
        $region39: #{tpu_custom_call.1} parent=27 // pred_region
          %s313 = ssub.s32 32, 32
          %314 = vsyncadd %s305, %s313
          %s315 = smul.addr %s22, 32
          %s316 = scalar_lea.hbm %s2, %s315
          %s318 = sshll.u32 %s308, 4
          %s319 = int_to_ptr.vmem [resolvable:$true] %s318
          %321 = dma.vmem_to_hbm [thread:$0]  %s319, 32, %s316, %s305
        $region40: #{tpu_custom_call.1} parent=27 // pred_fallthru
          _
      $region28: #{tpu_custom_call.1} parent=5 // pred_fallthru
        _
      %p322 = scmp.le.s32.totalorder 2, %s17
      // Predicated region
      $region41: #{tpu_custom_call.1} parent=5 // pred_check
        %p323 = pneg %p322
      $region42: #{tpu_custom_call.1} parent=5 // pred_check_branch
        %325 = sbr.rel (%p323) target = $region44
      $region43: #{tpu_custom_call.1} parent=5 // pred_region
        %s326 = ssub.s32 %s17, 2
        // Predicated region
        $region45: #{tpu_custom_call.1} parent=43 // pred_check
          %p327 = pneg %p98
        $region46: #{tpu_custom_call.1} parent=43 // pred_check_branch
          %329 = sbr.rel (%p327) target = $region48
        $region47: #{tpu_custom_call.1} parent=43 // pred_region
          %s330 = sand.u32 %s83, 1
          %s331 = scalar_lea.sflag [#allocation4], %s330
          %s332 = sand.u32 %s83, 1
          %s333 = smul.addr %s332, 2
          %s334 = scalar_lea.vmem [#allocation7], %s333
          %335 = dma.done %s331, 32
        $region48: #{tpu_custom_call.1} parent=43 // pred_fallthru
          _
      $region44: #{tpu_custom_call.1} parent=5 // pred_fallthru
        _
    $region6: #{tpu_custom_call.1} parent=1 // loop_footer
      %s21 = sadd.s32 1, %s17
    $region7: #{tpu_custom_call.1} parent=1 // loop_footer_branch
      %16 = sbr.rel target = $region3
    $region8: #{tpu_custom_call.1} parent=1 // loop_exit
      _
    %336 = vsyncpa [#allocation3], 1
    %s337 = scalar_lea.sflag [#allocation3], 1
    %338 = vsyncpa %s337, 1
    %339 = vsyncpa [#allocation6], 1
    %s340 = scalar_lea.sflag [#allocation6], 1
    %341 = vsyncpa %s340, 1
    %342 = vsyncpa [#allocation4], 1
    %s343 = scalar_lea.sflag [#allocation4], 1
    %344 = vsyncpa %s343, 1

</llo_original>
